<compile_context>
chip_gen: v7x
topology: tpu7x:2x2x1
jax: 0.10.0
libtpu: 0.0.40
codegen_flags: <defaults>
</compile_context>

<pallas_src>
import numpy as np
import jax
import jax.numpy as jnp
from jax.experimental import pallas as pl
from jax.experimental.pallas import tpu as pltpu

# ----------------------------- small config ---------------------------------
HIDDEN = 64
NUM_HEADS = 4
NUM_KV_HEADS = 2
HEAD_DIM = HIDDEN // NUM_HEADS          # 16
Q_SIZE = NUM_HEADS * HEAD_DIM           # 64
KV_SIZE = NUM_KV_HEADS * HEAD_DIM       # 32
QKV_SIZE = Q_SIZE + 2 * KV_SIZE         # 128
INTERMEDIATE = 128
SEQ = 8
ROPE_THETA = 10000.0
PARTIAL_ROTARY = 0.25                   # StableLM rope_pct
ROTARY_DIM = int(HEAD_DIM * PARTIAL_ROTARY)  # 4
ROTARY_HALF = ROTARY_DIM // 2                # 2
NORM_EPS = 1e-5
SCALING = HEAD_DIM ** -0.5
NEG_BIAS = -1e30                        # f32 additive mask (never cast to bf16)
GROUP = NUM_HEADS // NUM_KV_HEADS       # GQA group size


def _layernorm_noaffine(x, eps):
    """LayerNorm without affine; the affine is folded into the next weight."""
    mean = jnp.mean(x, axis=-1, keepdims=True)
    xc = x - mean
    var = jnp.mean(xc * xc, axis=-1, keepdims=True)
    return xc * jax.lax.rsqrt(var + eps)


# ------------------------------- fused kernel --------------------------------
def decoder_layer_kernel(
    x_ref,                              # [T, H] f32  hidden_states (residual #1)
    wqkv_ref,                           # [H, 2*QKV] bf16  [W | W@R], LN1 affine folded
    bqkv_ref,                           # [1, 2*QKV] f32   [b | b@R]  (b = ln1_b @ Wqkv)
    cos_ref, sin_ref,                   # [T, QKV]  f32 (SCALING folded into q cols)
    wo_ref,                             # [Q_SIZE, H] bf16
    wgu_ref,                            # [H, 2*I] bf16    LN2 affine folded
    bgu_ref,                            # [1, 2*I] f32
    wdown_ref,                          # [I, H] bf16
    out_ref,                            # [T, 2*H] f32 (hidden_out ++ residual_out)
    attn_scratch,                       # VMEM [T, Q_SIZE] f32
):
    x = x_ref[...]
    t = x.shape[0]
    bf16 = jnp.bfloat16

    # --- input_layernorm + fused [QKV | QKV@R] projection (one 256-wide matmul)
    xn = _layernorm_noaffine(x, NORM_EPS)
    qkv_both = jnp.dot(xn.astype(bf16), wqkv_ref[...],
                       preferred_element_type=jnp.float32) + bqkv_ref[...]
    qkv = qkv_both[:, :QKV_SIZE]          # lane-128-aligned slices (free)
    qkv_rot = qkv_both[:, QKV_SIZE:]      # == qkv @ R (R folded on host)

    # --- partial neox RoPE on q/k (+ q scaling), lane-dense elementwise ------
    # cos/sin are 1/0 on pass-through and v columns; q columns carry SCALING.
    roped = qkv * cos_ref[...] + qkv_rot * sin_ref[...]   # [T, QKV] f32

    # --- build [heads, T, head_dim] stacks (static lane slices, no transpose) -
    q = jnp.stack(
        [roped[:, h * HEAD_DIM:(h + 1) * HEAD_DIM] for h in range(NUM_HEADS)],
        axis=0)                                                    # [4, T, 16]
    k = jnp.stack(
        [roped[:, Q_SIZE + (h // GROUP) * HEAD_DIM:
               Q_SIZE + (h // GROUP + 1) * HEAD_DIM] for h in range(NUM_HEADS)],
        axis=0)                                                    # [4, T, 16] (GQA expand)
    v = jnp.stack(
        [roped[:, Q_SIZE + KV_SIZE + (h // GROUP) * HEAD_DIM:
               Q_SIZE + KV_SIZE + (h // GROUP + 1) * HEAD_DIM]
         for h in range(NUM_HEADS)],
        axis=0)                                                    # [4, T, 16]

    # --- causal additive bias generated in-kernel (no O(T^2) input) ----------
    row = jax.lax.broadcasted_iota(jnp.int32, (t, t), 0)
    col = jax.lax.broadcasted_iota(jnp.int32, (t, t), 1)
    bias = jnp.where(row >= col, 0.0, NEG_BIAS)                    # f32 [T, T]

    # --- batched causal GQA attention (single score/softmax/pv pass) ---------
    s = jnp.einsum('hqd,hkd->hqk', q.astype(bf16), k.astype(bf16),
                   preferred_element_type=jnp.float32) + bias      # [4, T, T]
    m = jnp.max(s, axis=-1, keepdims=True)
    p = jnp.exp(s - m)
    l = jnp.sum(p, axis=-1, keepdims=True)
    o = jnp.einsum('hqk,hkd->hqd', p.astype(bf16), v.astype(bf16),
                   preferred_element_type=jnp.float32)             # [4, T, 16]
    # normalization deferred past p@v; approx reciprocal -> EUP slot
    o = o * pl.reciprocal(l, approx=True)

    # --- scatter heads to static lane offsets (no lane concat) ---------------
    for h in range(NUM_HEADS):
        attn_scratch[:, h * HEAD_DIM:(h + 1) * HEAD_DIM] = o[h]

    # --- single o_proj matmul + residual --------------------------------------
    attn_res = x + jnp.dot(attn_scratch[...].astype(bf16), wo_ref[...],
                           preferred_element_type=jnp.float32)

    # --- post_attention_layernorm + SwiGLU MLP + residual ---------------------
    xn2 = _layernorm_noaffine(attn_res, NORM_EPS)
    gu = jnp.dot(xn2.astype(bf16), wgu_ref[...],
                 preferred_element_type=jnp.float32) + bgu_ref[...]
    gate = gu[:, :INTERMEDIATE]
    up = gu[:, INTERMEDIATE:]
    act = gate * jax.nn.sigmoid(gate) * up                         # f32 elementwise
    final = attn_res + jnp.dot(act.astype(bf16), wdown_ref[...],
                               preferred_element_type=jnp.float32)

    # --- one lane-dense [T, 128] store: (hidden_out, residual_out) -----------
    out_ref[...] = jnp.concatenate([final, attn_res], axis=-1)


# --------------------------- host-side helpers --------------------------------
def build_rope_tables(positions):
    """cos/sin of shape [T, QKV] with SCALING folded into q columns;
    cos=1 / sin=0 on non-rotated head dims and on the v columns.
    (Depends only on `positions` -> build ONCE per forward, shared by layers.)"""
    t = positions.shape[0]
    inv_freq = 1.0 / (ROPE_THETA ** (
        jnp.arange(0, ROTARY_DIM, 2, dtype=jnp.float32) / ROTARY_DIM))
    freqs = positions.astype(jnp.float32)[:, None] * inv_freq[None, :]   # [T, half]
    cos = jnp.cos(freqs)
    sin = jnp.sin(freqs)
    ones_pass = jnp.ones((t, HEAD_DIM - ROTARY_DIM), jnp.float32)
    zeros_pass = jnp.zeros((t, HEAD_DIM - ROTARY_DIM), jnp.float32)
    cos_head = jnp.concatenate([cos, cos, ones_pass], axis=-1)           # [T, D]
    sin_head = jnp.concatenate([sin, sin, zeros_pass], axis=-1)
    # NOTE: SCALING folded into ALL q columns (incl. pass-through) == scaling q.
    cos_q = jnp.tile(cos_head, (1, NUM_HEADS)) * SCALING
    sin_q = jnp.tile(sin_head, (1, NUM_HEADS)) * SCALING
    cos_k = jnp.tile(cos_head, (1, NUM_KV_HEADS))
    sin_k = jnp.tile(sin_head, (1, NUM_KV_HEADS))
    cos_v = jnp.ones((t, KV_SIZE), jnp.float32)
    sin_v = jnp.zeros((t, KV_SIZE), jnp.float32)
    cos_full = jnp.concatenate([cos_q, cos_k, cos_v], axis=-1)           # [T, QKV]
    sin_full = jnp.concatenate([sin_q, sin_k, sin_v], axis=-1)
    return cos_full, sin_full


def _build_rot_matrix():
    """[QKV, QKV] matrix so that x @ R == neox rotate_half(x) on the rotary
    dims of each q/k head (zero elsewhere). Used only on the host (folded
    into the QKV weight)."""
    r = np.zeros((QKV_SIZE, QKV_SIZE), np.float32)
    offsets = ([h * HEAD_DIM for h in range(NUM_HEADS)] +
               [Q_SIZE + h * HEAD_DIM for h in range(NUM_KV_HEADS)])
    for off in offsets:
        for j in range(ROTARY_HALF):
            r[off + ROTARY_HALF + j, off + j] = -1.0   # out1 gets -x2
            r[off + j, off + ROTARY_HALF + j] = 1.0    # out2 gets +x1
    return jnp.asarray(r)


def prepare_kernel_params(params):
    """One-time host-side folding: LN affine into projection weights,
    rotation matrix into the QKV weight, MXU operands stored in bf16."""
    rot = _build_rot_matrix()
    # input_layernorm affine folded into qkv_proj
    w_f = params["wqkv"] * params["ln1_w"].reshape(-1, 1)     # diag(ln1_w) @ Wqkv
    b_f = params["ln1_b"] @ params["wqkv"]                    # [1, QKV]
    wqkv_cat = jnp.concatenate([w_f, w_f @ rot], axis=-1)     # [H, 2*QKV]
    bqkv_cat = jnp.concatenate([b_f, b_f @ rot], axis=-1)     # [1, 2*QKV]
    # post_attention_layernorm affine folded into gate_up_proj
    wgu_f = params["wgu"] * params["ln2_w"].reshape(-1, 1)
    bgu_f = params["ln2_b"] @ params["wgu"]
    return {
        "wqkv_cat": wqkv_cat.astype(jnp.bfloat16),
        "bqkv_cat": bqkv_cat.astype(jnp.float32),
        "wo": params["wo"].astype(jnp.bfloat16),
        "wgu": wgu_f.astype(jnp.bfloat16),
        "bgu": bgu_f.astype(jnp.float32),
        "wdown": params["wdown"].astype(jnp.bfloat16),
    }


# --------------------------- decoder layer forward ---------------------------
def stablelm_decoder_layer(positions, hidden_states, kparams, rope_tables=None):
    t = hidden_states.shape[0]
    if rope_tables is None:
        rope_tables = build_rope_tables(positions)
    cos_full, sin_full = rope_tables

    operands = (
        hidden_states,
        kparams["wqkv_cat"], kparams["bqkv_cat"],
        cos_full, sin_full,
        kparams["wo"],
        kparams["wgu"], kparams["bgu"],
        kparams["wdown"],
    )

    flops = (2 * t * HIDDEN * (2 * QKV_SIZE)            # fused qkv / qkv@R proj
             + 2 * NUM_HEADS * t * t * HEAD_DIM * 2     # scores + p@v
             + 2 * t * Q_SIZE * HIDDEN                  # o_proj
             + 2 * t * HIDDEN * (2 * INTERMEDIATE)      # gate_up
             + 2 * t * INTERMEDIATE * HIDDEN)           # down
    transcendentals = NUM_HEADS * t * t + t * INTERMEDIATE + 2 * t + NUM_HEADS * t
    bytes_accessed = (sum(int(a.size) * a.dtype.itemsize for a in operands)
                      + t * 2 * HIDDEN * 4)

    out = pl.pallas_call(
        decoder_layer_kernel,
        out_shape=jax.ShapeDtypeStruct((t, 2 * HIDDEN), jnp.float32),
        in_specs=[pl.BlockSpec(memory_space=pltpu.MemorySpace.VMEM)] * len(operands),
        out_specs=pl.BlockSpec(memory_space=pltpu.MemorySpace.VMEM),
        scratch_shapes=[pltpu.VMEM((t, Q_SIZE), jnp.float32)],
        cost_estimate=pl.CostEstimate(flops=flops,
                                      transcendentals=transcendentals,
                                      bytes_accessed=bytes_accessed),
    )(*operands)

    hidden_out = out[:, :HIDDEN]
    residual_out = out[:, HIDDEN:]
    # torch forward returns (hidden_states, residual); residual is the
    # post-attention residual stream.
    return hidden_out, residual_out
    # TODO(synk): for real StableLM sizes add a token-tile grid
    # (dimension_semantics=("parallel", ...), flash-style kv "arbitrary" axis
    # with running max/sum) so both v7x TensorCores are used, and set
    # vmem_limit_bytes via pltpu.CompilerParams for v7x's 64 MiB VMEM.


# ----------------------------- pure-JAX reference -----------------------------
def _layernorm_ref(x, w, b, eps):
    mean = jnp.mean(x, axis=-1, keepdims=True)
    xc = x - mean
    var = jnp.mean(xc * xc, axis=-1, keepdims=True)
    return xc * jax.lax.rsqrt(var + eps) * w + b


def _rope_ref(positions, x, num_heads):
    t = x.shape[0]
    xh = x.reshape(t, num_heads, HEAD_DIM)
    inv_freq = 1.0 / (ROPE_THETA ** (
        jnp.arange(0, ROTARY_DIM, 2, dtype=jnp.float32) / ROTARY_DIM))
    freqs = positions.astype(jnp.float32)[:, None] * inv_freq[None, :]
    cos = jnp.cos(freqs)[:, None, :]
    sin = jnp.sin(freqs)[:, None, :]
    x1 = xh[..., :ROTARY_HALF]
    x2 = xh[..., ROTARY_HALF:ROTARY_DIM]
    xp = xh[..., ROTARY_DIM:]
    o1 = x1 * cos - x2 * sin
    o2 = x2 * cos + x1 * sin
    return jnp.concatenate([o1, o2, xp], axis=-1).reshape(t, num_heads * HEAD_DIM)


def stablelm_decoder_layer_ref(positions, hidden_states, params):
    x = hidden_states
    xn = _layernorm_ref(x, params["ln1_w"], params["ln1_b"], NORM_EPS)
    qkv = xn @ params["wqkv"]
    q = _rope_ref(positions, qkv[:, :Q_SIZE], NUM_HEADS)
    k = _rope_ref(positions, qkv[:, Q_SIZE:Q_SIZE + KV_SIZE], NUM_KV_HEADS)
    v = qkv[:, Q_SIZE + KV_SIZE:]
    t = x.shape[0]
    causal = jnp.tril(jnp.ones((t, t), bool))
    outs = []
    for h in range(NUM_HEADS):
        kvh = h // GROUP
        qh = q[:, h * HEAD_DIM:(h + 1) * HEAD_DIM] * SCALING
        kh = k[:, kvh * HEAD_DIM:(kvh + 1) * HEAD_DIM]
        vh = v[:, kvh * HEAD_DIM:(kvh + 1) * HEAD_DIM]
        s = jnp.where(causal, qh @ kh.T, -jnp.inf)
        p = jax.nn.softmax(s, axis=-1)
        outs.append(p @ vh)
    attn_res = x + jnp.concatenate(outs, axis=-1) @ params["wo"]
    xn2 = _layernorm_ref(attn_res, params["ln2_w"], params["ln2_b"], NORM_EPS)
    gu = xn2 @ params["wgu"]
    act = jax.nn.silu(gu[:, :INTERMEDIATE]) * gu[:, INTERMEDIATE:]
    return attn_res + act @ params["wdown"], attn_res


def init_params(key):
    ks = jax.random.split(key, 4)
    scale = 0.02
    return {
        "ln1_w": jnp.ones((1, HIDDEN), jnp.float32),
        "ln1_b": jnp.zeros((1, HIDDEN), jnp.float32),
        "wqkv": scale * jax.random.normal(ks[0], (HIDDEN, QKV_SIZE), jnp.float32),
        "wo": scale * jax.random.normal(ks[1], (Q_SIZE, HIDDEN), jnp.float32),
        "ln2_w": jnp.ones((1, HIDDEN), jnp.float32),
        "ln2_b": jnp.zeros((1, HIDDEN), jnp.float32),
        "wgu": scale * jax.random.normal(ks[2], (HIDDEN, 2 * INTERMEDIATE), jnp.float32),
        "wdown": scale * jax.random.normal(ks[3], (INTERMEDIATE, HIDDEN), jnp.float32),
    }


if __name__ == "__main__":
    key = jax.random.PRNGKey(0)
    k_param, k_x = jax.random.split(key)
    params = init_params(k_param)
    kparams = prepare_kernel_params(params)          # one-time weight folding
    positions = jnp.arange(SEQ, dtype=jnp.int32)
    rope_tables = build_rope_tables(positions)       # hoisted: shared by all layers
    hidden_states = jax.random.normal(k_x, (SEQ, HIDDEN), jnp.float32)

    fwd = jax.jit(stablelm_decoder_layer)
    hidden_out, residual_out = fwd(positions, hidden_states, kparams, rope_tables)
    jax.block_until_ready((hidden_out, residual_out))
    assert hidden_out.shape == (SEQ, HIDDEN) and residual_out.shape == (SEQ, HIDDEN)

    # correctness check against a pure-JAX f32 reference (bf16 MXU operands +
    # approx reciprocal -> generous tolerance)
    h_ref, r_ref = stablelm_decoder_layer_ref(positions, hidden_states, params)
    assert jnp.allclose(hidden_out, h_ref, atol=2e-2, rtol=2e-2)
    assert jnp.allclose(residual_out, r_ref, atol=2e-2, rtol=2e-2)

    print("KERNEL_OK")
</pallas_src>

<mosaic_0001>
module attributes {stable_mosaic.version = 11 : i64} {
  func.func @decoder_layer_kernel(%arg0: memref<8x64xf32, #tpu.memory_space<vmem>>, %arg1: memref<64x256xbf16, #tpu.memory_space<vmem>>, %arg2: memref<1x256xf32, #tpu.memory_space<vmem>>, %arg3: memref<8x128xf32, #tpu.memory_space<vmem>>, %arg4: memref<8x128xf32, #tpu.memory_space<vmem>>, %arg5: memref<64x64xbf16, #tpu.memory_space<vmem>>, %arg6: memref<64x256xbf16, #tpu.memory_space<vmem>>, %arg7: memref<1x256xf32, #tpu.memory_space<vmem>>, %arg8: memref<128x64xbf16, #tpu.memory_space<vmem>>, %arg9: memref<8x128xf32, #tpu.memory_space<vmem>>, %arg10: memref<8x64xf32, #tpu.memory_space<vmem>>) attributes {dimension_semantics = [], scalar_prefetch = 0 : i64, scratch_operands = 1 : i64, tpu.core_type = #tpu.core_type<tc>} {
    %c0 = arith.constant 0 : index
    %c0_0 = arith.constant 0 : index
    %0 = vector.load %arg0[%c0, %c0_0] : memref<8x64xf32, #tpu.memory_space<vmem>>, vector<8x64xf32>
    %cst = arith.constant dense<0.000000e+00> : vector<8xf32>
    %1 = vector.multi_reduction <add>, %0, %cst [1] : vector<8x64xf32> to vector<8xf32>
    %2 = vector.shape_cast %1 : vector<8xf32> to vector<8x1xf32>
    %cst_1 = arith.constant 6.400000e+01 : f32
    %3 = vector.broadcast %cst_1 : f32 to vector<8x1xf32>
    %4 = arith.divf %2, %3 : vector<8x1xf32>
    %5 = vector.broadcast %4 : vector<8x1xf32> to vector<8x64xf32>
    %6 = arith.subf %0, %5 : vector<8x64xf32>
    %7 = arith.mulf %6, %6 : vector<8x64xf32>
    %cst_2 = arith.constant dense<0.000000e+00> : vector<8xf32>
    %8 = vector.multi_reduction <add>, %7, %cst_2 [1] : vector<8x64xf32> to vector<8xf32>
    %9 = vector.shape_cast %8 : vector<8xf32> to vector<8x1xf32>
    %cst_3 = arith.constant 6.400000e+01 : f32
    %10 = vector.broadcast %cst_3 : f32 to vector<8x1xf32>
    %11 = arith.divf %9, %10 : vector<8x1xf32>
    %cst_4 = arith.constant 9.99999974E-6 : f32
    %12 = vector.broadcast %cst_4 : f32 to vector<8x1xf32>
    %13 = arith.addf %11, %12 : vector<8x1xf32>
    %14 = math.rsqrt %13 : vector<8x1xf32>
    %15 = vector.broadcast %14 : vector<8x1xf32> to vector<8x64xf32>
    %16 = arith.mulf %6, %15 : vector<8x64xf32>
    %17 = arith.truncf %16 : vector<8x64xf32> to vector<8x64xbf16>
    %c0_5 = arith.constant 0 : index
    %c0_6 = arith.constant 0 : index
    %18 = vector.load %arg1[%c0_5, %c0_6] : memref<64x256xbf16, #tpu.memory_space<vmem>>, vector<64x256xbf16>
    %cst_7 = arith.constant dense<0.000000e+00> : vector<8x256xf32>
    %19 = tpu.matmul %17, %18, %cst_7 {dimension_numbers = #tpu.dot_dimension_numbers<[1], [0], [0], [1], [0, 0, 1, 1], [], []>} : vector<8x64xbf16>, vector<64x256xbf16>, vector<8x256xf32> -> vector<8x256xf32>
    %c0_8 = arith.constant 0 : index
    %c0_9 = arith.constant 0 : index
    %20 = vector.load %arg2[%c0_8, %c0_9] : memref<1x256xf32, #tpu.memory_space<vmem>>, vector<1x256xf32>
    %21 = vector.broadcast %20 : vector<1x256xf32> to vector<8x256xf32>
    %22 = arith.addf %19, %21 : vector<8x256xf32>
    %23 = vector.extract_strided_slice %22 {offsets = [0, 0], sizes = [8, 128], strides = [1, 1]} : vector<8x256xf32> to vector<8x128xf32>
    %24 = vector.extract_strided_slice %22 {offsets = [0, 128], sizes = [8, 128], strides = [1, 1]} : vector<8x256xf32> to vector<8x128xf32>
    %c0_10 = arith.constant 0 : index
    %c0_11 = arith.constant 0 : index
    %25 = vector.load %arg3[%c0_10, %c0_11] : memref<8x128xf32, #tpu.memory_space<vmem>>, vector<8x128xf32>
    %26 = arith.mulf %23, %25 : vector<8x128xf32>
    %c0_12 = arith.constant 0 : index
    %c0_13 = arith.constant 0 : index
    %27 = vector.load %arg4[%c0_12, %c0_13] : memref<8x128xf32, #tpu.memory_space<vmem>>, vector<8x128xf32>
    %28 = arith.mulf %24, %27 : vector<8x128xf32>
    %29 = arith.addf %26, %28 : vector<8x128xf32>
    %30 = vector.extract_strided_slice %29 {offsets = [0, 0], sizes = [8, 16], strides = [1, 1]} : vector<8x128xf32> to vector<8x16xf32>
    %31 = vector.extract_strided_slice %29 {offsets = [0, 16], sizes = [8, 16], strides = [1, 1]} : vector<8x128xf32> to vector<8x16xf32>
    %32 = vector.extract_strided_slice %29 {offsets = [0, 32], sizes = [8, 16], strides = [1, 1]} : vector<8x128xf32> to vector<8x16xf32>
    %33 = vector.extract_strided_slice %29 {offsets = [0, 48], sizes = [8, 16], strides = [1, 1]} : vector<8x128xf32> to vector<8x16xf32>
    %34 = vector.shape_cast %30 : vector<8x16xf32> to vector<1x8x16xf32>
    %35 = vector.shape_cast %31 : vector<8x16xf32> to vector<1x8x16xf32>
    %36 = vector.shape_cast %32 : vector<8x16xf32> to vector<1x8x16xf32>
    %37 = vector.shape_cast %33 : vector<8x16xf32> to vector<1x8x16xf32>
    %38 = tpu.concatenate %34, %35, %36, %37 in 0 : vector<1x8x16xf32>, vector<1x8x16xf32>, vector<1x8x16xf32>, vector<1x8x16xf32> -> vector<4x8x16xf32>
    %39 = vector.extract_strided_slice %29 {offsets = [0, 64], sizes = [8, 16], strides = [1, 1]} : vector<8x128xf32> to vector<8x16xf32>
    %40 = vector.extract_strided_slice %29 {offsets = [0, 64], sizes = [8, 16], strides = [1, 1]} : vector<8x128xf32> to vector<8x16xf32>
    %41 = vector.extract_strided_slice %29 {offsets = [0, 80], sizes = [8, 16], strides = [1, 1]} : vector<8x128xf32> to vector<8x16xf32>
    %42 = vector.extract_strided_slice %29 {offsets = [0, 80], sizes = [8, 16], strides = [1, 1]} : vector<8x128xf32> to vector<8x16xf32>
    %43 = vector.shape_cast %39 : vector<8x16xf32> to vector<1x8x16xf32>
    %44 = vector.shape_cast %40 : vector<8x16xf32> to vector<1x8x16xf32>
    %45 = vector.shape_cast %41 : vector<8x16xf32> to vector<1x8x16xf32>
    %46 = vector.shape_cast %42 : vector<8x16xf32> to vector<1x8x16xf32>
    %47 = tpu.concatenate %43, %44, %45, %46 in 0 : vector<1x8x16xf32>, vector<1x8x16xf32>, vector<1x8x16xf32>, vector<1x8x16xf32> -> vector<4x8x16xf32>
    %48 = vector.extract_strided_slice %29 {offsets = [0, 96], sizes = [8, 16], strides = [1, 1]} : vector<8x128xf32> to vector<8x16xf32>
    %49 = vector.extract_strided_slice %29 {offsets = [0, 96], sizes = [8, 16], strides = [1, 1]} : vector<8x128xf32> to vector<8x16xf32>
    %50 = vector.extract_strided_slice %29 {offsets = [0, 112], sizes = [8, 16], strides = [1, 1]} : vector<8x128xf32> to vector<8x16xf32>
    %51 = vector.extract_strided_slice %29 {offsets = [0, 112], sizes = [8, 16], strides = [1, 1]} : vector<8x128xf32> to vector<8x16xf32>
    %52 = vector.shape_cast %48 : vector<8x16xf32> to vector<1x8x16xf32>
    %53 = vector.shape_cast %49 : vector<8x16xf32> to vector<1x8x16xf32>
    %54 = vector.shape_cast %50 : vector<8x16xf32> to vector<1x8x16xf32>
    %55 = vector.shape_cast %51 : vector<8x16xf32> to vector<1x8x16xf32>
    %56 = tpu.concatenate %52, %53, %54, %55 in 0 : vector<1x8x16xf32>, vector<1x8x16xf32>, vector<1x8x16xf32>, vector<1x8x16xf32> -> vector<4x8x16xf32>
    %57 = tpu.iota {dimensions = array<i32: 0>} : vector<8x8xi32>
    %58 = tpu.iota {dimensions = array<i32: 1>} : vector<8x8xi32>
    %59 = arith.cmpi sge, %57, %58 : vector<8x8xi32>
    %cst_14 = arith.constant 0.000000e+00 : f32
    %cst_15 = arith.constant -1.000000e+30 : f32
    %60 = vector.broadcast %cst_14 : f32 to vector<8x8xf32>
    %61 = vector.broadcast %cst_15 : f32 to vector<8x8xf32>
    %62 = arith.select %59, %60, %61 : vector<8x8xi1>, vector<8x8xf32>
    %63 = arith.truncf %38 : vector<4x8x16xf32> to vector<4x8x16xbf16>
    %64 = arith.truncf %47 : vector<4x8x16xf32> to vector<4x8x16xbf16>
    "tpu.trace_start"() <{level = 10 : i32, message = "hqd,hkd->hqk"}> : () -> ()
    %cst_16 = arith.constant dense<0.000000e+00> : vector<4x8x8xf32>
    %65 = tpu.matmul %63, %64, %cst_16 {dimension_numbers = #tpu.dot_dimension_numbers<[2], [2], [1], [1], [0, 0, 0, 1, 1, 1], [0], [0]>} : vector<4x8x16xbf16>, vector<4x8x16xbf16>, vector<4x8x8xf32> -> vector<4x8x8xf32>
    "tpu.trace_stop"() : () -> ()
    %66 = vector.shape_cast %62 : vector<8x8xf32> to vector<1x8x8xf32>
    %67 = vector.broadcast %66 : vector<1x8x8xf32> to vector<4x8x8xf32>
    %68 = arith.addf %65, %67 : vector<4x8x8xf32>
    %cst_17 = arith.constant dense<0xFF800000> : vector<4x8xf32>
    %69 = vector.multi_reduction <maximumf>, %68, %cst_17 [2] : vector<4x8x8xf32> to vector<4x8xf32>
    %70 = vector.shape_cast %69 : vector<4x8xf32> to vector<4x8x1xf32>
    %71 = vector.broadcast %70 : vector<4x8x1xf32> to vector<4x8x8xf32>
    %72 = arith.subf %68, %71 : vector<4x8x8xf32>
    %73 = math.exp %72 : vector<4x8x8xf32>
    %cst_18 = arith.constant dense<0.000000e+00> : vector<4x8xf32>
    %74 = vector.multi_reduction <add>, %73, %cst_18 [2] : vector<4x8x8xf32> to vector<4x8xf32>
    %75 = vector.shape_cast %74 : vector<4x8xf32> to vector<4x8x1xf32>
    %76 = arith.truncf %73 : vector<4x8x8xf32> to vector<4x8x8xbf16>
    %77 = arith.truncf %56 : vector<4x8x16xf32> to vector<4x8x16xbf16>
    "tpu.trace_start"() <{level = 10 : i32, message = "hqk,hkd->hqd"}> : () -> ()
    %cst_19 = arith.constant dense<0.000000e+00> : vector<4x8x16xf32>
    %78 = tpu.matmul %76, %77, %cst_19 {dimension_numbers = #tpu.dot_dimension_numbers<[2], [1], [1], [2], [0, 0, 0, 1, 1, 2], [0], [0]>} : vector<4x8x8xbf16>, vector<4x8x16xbf16>, vector<4x8x16xf32> -> vector<4x8x16xf32>
    "tpu.trace_stop"() : () -> ()
    %79 = tpu.reciprocal %75 {approx = true} : vector<4x8x1xf32> -> vector<4x8x1xf32>
    %80 = vector.broadcast %79 : vector<4x8x1xf32> to vector<4x8x16xf32>
    %81 = arith.mulf %78, %80 : vector<4x8x16xf32>
    %82 = vector.extract_strided_slice %81 {offsets = [0, 0, 0], sizes = [1, 8, 16], strides = [1, 1, 1]} : vector<4x8x16xf32> to vector<1x8x16xf32>
    %83 = vector.shape_cast %82 : vector<1x8x16xf32> to vector<8x16xf32>
    %c0_20 = arith.constant 0 : index
    %c0_21 = arith.constant 0 : index
    %84 = vector.load %arg10[%c0_20, %c0_21] : memref<8x64xf32, #tpu.memory_space<vmem>>, vector<8x16xf32>
    tpu.vector_store %arg10[%c0_20, %c0_21], %83 {strides = array<i32>} : memref<8x64xf32, #tpu.memory_space<vmem>>, vector<8x16xf32>,
    %85 = vector.extract_strided_slice %81 {offsets = [1, 0, 0], sizes = [1, 8, 16], strides = [1, 1, 1]} : vector<4x8x16xf32> to vector<1x8x16xf32>
    %86 = vector.shape_cast %85 : vector<1x8x16xf32> to vector<8x16xf32>
    %c0_22 = arith.constant 0 : index
    %c16 = arith.constant 16 : index
    %87 = vector.load %arg10[%c0_22, %c16] : memref<8x64xf32, #tpu.memory_space<vmem>>, vector<8x16xf32>
    tpu.vector_store %arg10[%c0_22, %c16], %86 {strides = array<i32>} : memref<8x64xf32, #tpu.memory_space<vmem>>, vector<8x16xf32>,
    %88 = vector.extract_strided_slice %81 {offsets = [2, 0, 0], sizes = [1, 8, 16], strides = [1, 1, 1]} : vector<4x8x16xf32> to vector<1x8x16xf32>
    %89 = vector.shape_cast %88 : vector<1x8x16xf32> to vector<8x16xf32>
    %c0_23 = arith.constant 0 : index
    %c32 = arith.constant 32 : index
    %90 = vector.load %arg10[%c0_23, %c32] : memref<8x64xf32, #tpu.memory_space<vmem>>, vector<8x16xf32>
    tpu.vector_store %arg10[%c0_23, %c32], %89 {strides = array<i32>} : memref<8x64xf32, #tpu.memory_space<vmem>>, vector<8x16xf32>,
    %91 = vector.extract_strided_slice %81 {offsets = [3, 0, 0], sizes = [1, 8, 16], strides = [1, 1, 1]} : vector<4x8x16xf32> to vector<1x8x16xf32>
    %92 = vector.shape_cast %91 : vector<1x8x16xf32> to vector<8x16xf32>
    %c0_24 = arith.constant 0 : index
    %c48 = arith.constant 48 : index
    %93 = vector.load %arg10[%c0_24, %c48] : memref<8x64xf32, #tpu.memory_space<vmem>>, vector<8x16xf32>
    tpu.vector_store %arg10[%c0_24, %c48], %92 {strides = array<i32>} : memref<8x64xf32, #tpu.memory_space<vmem>>, vector<8x16xf32>,
    %c0_25 = arith.constant 0 : index
    %c0_26 = arith.constant 0 : index
    %94 = vector.load %arg10[%c0_25, %c0_26] : memref<8x64xf32, #tpu.memory_space<vmem>>, vector<8x64xf32>
    %95 = arith.truncf %94 : vector<8x64xf32> to vector<8x64xbf16>
    %c0_27 = arith.constant 0 : index
    %c0_28 = arith.constant 0 : index
    %96 = vector.load %arg5[%c0_27, %c0_28] : memref<64x64xbf16, #tpu.memory_space<vmem>>, vector<64x64xbf16>
    %cst_29 = arith.constant dense<0.000000e+00> : vector<8x64xf32>
    %97 = tpu.matmul %95, %96, %cst_29 {dimension_numbers = #tpu.dot_dimension_numbers<[1], [0], [0], [1], [0, 0, 1, 1], [], []>} : vector<8x64xbf16>, vector<64x64xbf16>, vector<8x64xf32> -> vector<8x64xf32>
    %98 = arith.addf %0, %97 : vector<8x64xf32>
    %cst_30 = arith.constant dense<0.000000e+00> : vector<8xf32>
    %99 = vector.multi_reduction <add>, %98, %cst_30 [1] : vector<8x64xf32> to vector<8xf32>
    %100 = vector.shape_cast %99 : vector<8xf32> to vector<8x1xf32>
    %cst_31 = arith.constant 6.400000e+01 : f32
    %101 = vector.broadcast %cst_31 : f32 to vector<8x1xf32>
    %102 = arith.divf %100, %101 : vector<8x1xf32>
    %103 = vector.broadcast %102 : vector<8x1xf32> to vector<8x64xf32>
    %104 = arith.subf %98, %103 : vector<8x64xf32>
    %105 = arith.mulf %104, %104 : vector<8x64xf32>
    %cst_32 = arith.constant dense<0.000000e+00> : vector<8xf32>
    %106 = vector.multi_reduction <add>, %105, %cst_32 [1] : vector<8x64xf32> to vector<8xf32>
    %107 = vector.shape_cast %106 : vector<8xf32> to vector<8x1xf32>
    %cst_33 = arith.constant 6.400000e+01 : f32
    %108 = vector.broadcast %cst_33 : f32 to vector<8x1xf32>
    %109 = arith.divf %107, %108 : vector<8x1xf32>
    %cst_34 = arith.constant 9.99999974E-6 : f32
    %110 = vector.broadcast %cst_34 : f32 to vector<8x1xf32>
    %111 = arith.addf %109, %110 : vector<8x1xf32>
    %112 = math.rsqrt %111 : vector<8x1xf32>
    %113 = vector.broadcast %112 : vector<8x1xf32> to vector<8x64xf32>
    %114 = arith.mulf %104, %113 : vector<8x64xf32>
    %115 = arith.truncf %114 : vector<8x64xf32> to vector<8x64xbf16>
    %c0_35 = arith.constant 0 : index
    %c0_36 = arith.constant 0 : index
    %116 = vector.load %arg6[%c0_35, %c0_36] : memref<64x256xbf16, #tpu.memory_space<vmem>>, vector<64x256xbf16>
    %cst_37 = arith.constant dense<0.000000e+00> : vector<8x256xf32>
    %117 = tpu.matmul %115, %116, %cst_37 {dimension_numbers = #tpu.dot_dimension_numbers<[1], [0], [0], [1], [0, 0, 1, 1], [], []>} : vector<8x64xbf16>, vector<64x256xbf16>, vector<8x256xf32> -> vector<8x256xf32>
    %c0_38 = arith.constant 0 : index
    %c0_39 = arith.constant 0 : index
    %118 = vector.load %arg7[%c0_38, %c0_39] : memref<1x256xf32, #tpu.memory_space<vmem>>, vector<1x256xf32>
    %119 = vector.broadcast %118 : vector<1x256xf32> to vector<8x256xf32>
    %120 = arith.addf %117, %119 : vector<8x256xf32>
    %121 = vector.extract_strided_slice %120 {offsets = [0, 0], sizes = [8, 128], strides = [1, 1]} : vector<8x256xf32> to vector<8x128xf32>
    %122 = vector.extract_strided_slice %120 {offsets = [0, 128], sizes = [8, 128], strides = [1, 1]} : vector<8x256xf32> to vector<8x128xf32>
    %123 = arith.negf %121 : vector<8x128xf32>
    %124 = math.exp %123 : vector<8x128xf32>
    %cst_40 = arith.constant 1.000000e+00 : f32
    %125 = vector.broadcast %cst_40 : f32 to vector<8x128xf32>
    %126 = arith.addf %125, %124 : vector<8x128xf32>
    %127 = arith.divf %125, %126 : vector<8x128xf32>
    %128 = arith.mulf %121, %127 : vector<8x128xf32>
    %129 = arith.mulf %128, %122 : vector<8x128xf32>
    %130 = arith.truncf %129 : vector<8x128xf32> to vector<8x128xbf16>
    %c0_41 = arith.constant 0 : index
    %c0_42 = arith.constant 0 : index
    %131 = vector.load %arg8[%c0_41, %c0_42] : memref<128x64xbf16, #tpu.memory_space<vmem>>, vector<128x64xbf16>
    %cst_43 = arith.constant dense<0.000000e+00> : vector<8x64xf32>
    %132 = tpu.matmul %130, %131, %cst_43 {dimension_numbers = #tpu.dot_dimension_numbers<[1], [0], [0], [1], [0, 0, 1, 1], [], []>} : vector<8x128xbf16>, vector<128x64xbf16>, vector<8x64xf32> -> vector<8x64xf32>
    %133 = arith.addf %98, %132 : vector<8x64xf32>
    %134 = tpu.concatenate %133, %98 in 1 : vector<8x64xf32>, vector<8x64xf32> -> vector<8x128xf32>
    %c0_44 = arith.constant 0 : index
    %c0_45 = arith.constant 0 : index
    %135 = vector.load %arg9[%c0_44, %c0_45] : memref<8x128xf32, #tpu.memory_space<vmem>>, vector<8x128xf32>
    tpu.vector_store %arg9[%c0_44, %c0_45], %134 {strides = array<i32>} : memref<8x128xf32, #tpu.memory_space<vmem>>, vector<8x128xf32>,
    return
  }
}

</mosaic_0001>

<llo_original>
// kernel: stablelm_decoder_layer.1
$region0: #{stablelm_decoder_layer.1}
  #allocation0 [shape = 'u32[]', space=smem, size = 0x4, offset = 0x4, fixed_abs, tag = 'smem constant byte address 0x4 - core index']
  #allocation1 [shape = 'u32[144,128]{1,0:T(1,128)}', space=vmem, size = 0x12000, scoped, tag = 'internal scratch']
  #allocation2 [shape = 'f32[8,64]{1,0:T(8,128)}', space=vmem, size = 0x1000, scoped, tag = 'scratch operand']
  %s0 = inlined_call_operand.vmem [shape: f32[8,64], index: 0, kind: input, shape index: {}]
  %s1 = inlined_call_operand.vmem [shape: bf16[64,256], index: 1, kind: input, shape index: {}]
  %s2 = inlined_call_operand.vmem [shape: f32[1,256], index: 2, kind: input, shape index: {}]
  %s3 = inlined_call_operand.vmem [shape: f32[8,128], index: 3, kind: input, shape index: {}]
  %s4 = inlined_call_operand.vmem [shape: f32[8,128], index: 4, kind: input, shape index: {}]
  %s5 = inlined_call_operand.vmem [shape: bf16[64,64], index: 5, kind: input, shape index: {}]
  %s6 = inlined_call_operand.hbm [shape: bf16[64,256], index: 6, kind: input, shape index: {}]
  %s7 = inlined_call_operand.hbm [shape: f32[1,256], index: 7, kind: input, shape index: {}]
  %s8 = inlined_call_operand.vmem [shape: bf16[128,64], index: 8, kind: input, shape index: {}]
  %s9 = inlined_call_operand.vmem [shape: f32[8,128], index: 9, kind: output, shape index: {}]
  %s10 = sld [smem:[#allocation0]]
  $region54: #{stablelm_decoder_layer.1} parent=0
    _
  %s12 = ssub.s32 1, %s10
  %s13 = scalar_select 0, %s12, %s10
  $region1: #{stablelm_decoder_layer.1} parent=0
    #allocation3 [shape = 'u8[32768]{0}', space=vmem, size = 0x8000, scoped, tag = 'input window, operand 6, single buffered']
    #allocation4 [shape = 's32[1]{0}', space=sflag, size = 0x4, scoped, tag = 'scoped memory for stablelm_decoder_layer.1']
    #allocation5 [shape = 'u8[1024]{0}', space=vmem, size = 0x400, scoped, tag = 'input window, operand 7, single buffered']
    #allocation6 [shape = 's32[1]{0}', space=sflag, size = 0x4, scoped, tag = 'scoped memory for stablelm_decoder_layer.1']
    %14 = vsyncpa [#allocation4], 0
    %15 = vsyncpa [#allocation6], 0
    // Predicated region
    $region2: #{stablelm_decoder_layer.1} parent=1 // pred_check
      _
    $region3: #{stablelm_decoder_layer.1} parent=1 // pred_check_branch
      %17 = sbr.rel (0) target = $region5
    $region4: #{stablelm_decoder_layer.1} parent=1 // pred_region
      _
    $region5: #{stablelm_decoder_layer.1} parent=1 // pred_fallthru
      _
    // Predicated region
    $region6: #{stablelm_decoder_layer.1} parent=1 // pred_check
      _
    $region7: #{stablelm_decoder_layer.1} parent=1 // pred_check_branch
      %19 = sbr.rel (0) target = $region9
    $region8: #{stablelm_decoder_layer.1} parent=1 // pred_region
      _
    $region9: #{stablelm_decoder_layer.1} parent=1 // pred_fallthru
      _
    // Predicated region
    $region10: #{stablelm_decoder_layer.1} parent=1 // pred_check
      _
    $region11: #{stablelm_decoder_layer.1} parent=1 // pred_check_branch
      %21 = sbr.rel (0) target = $region13
    $region12: #{stablelm_decoder_layer.1} parent=1 // pred_region
      _
    $region13: #{stablelm_decoder_layer.1} parent=1 // pred_fallthru
      _
    // Predicated region
    $region14: #{stablelm_decoder_layer.1} parent=1 // pred_check
      _
    $region15: #{stablelm_decoder_layer.1} parent=1 // pred_check_branch
      %23 = sbr.rel (0) target = $region17
    $region16: #{stablelm_decoder_layer.1} parent=1 // pred_region
      _
    $region17: #{stablelm_decoder_layer.1} parent=1 // pred_fallthru
      _
    // Predicated region
    $region18: #{stablelm_decoder_layer.1} parent=1 // pred_check
      _
    $region19: #{stablelm_decoder_layer.1} parent=1 // pred_check_branch
      %25 = sbr.rel (0) target = $region21
    $region20: #{stablelm_decoder_layer.1} parent=1 // pred_region
      _
    $region21: #{stablelm_decoder_layer.1} parent=1 // pred_fallthru
      _
    // Predicated region
    $region22: #{stablelm_decoder_layer.1} parent=1 // pred_check
      _
    $region23: #{stablelm_decoder_layer.1} parent=1 // pred_check_branch
      %27 = sbr.rel (0) target = $region25
    $region24: #{stablelm_decoder_layer.1} parent=1 // pred_region
      _
    $region25: #{stablelm_decoder_layer.1} parent=1 // pred_fallthru
      _
    // Predicated region
    $region26: #{stablelm_decoder_layer.1} parent=1 // pred_check
      _
    $region27: #{stablelm_decoder_layer.1} parent=1 // pred_check_branch
      %29 = sbr.rel (0) target = $region29
    $region28: #{stablelm_decoder_layer.1} parent=1 // pred_region
      %s31 = ssub.s32 1024, 1024
      %32 = vsyncadd [#allocation4], %s31
      %s33 = sshll.u32 [#allocation3], 4
      %s34 = int_to_ptr.vmem [resolvable:$true] %s33
      %39 = dma.hbm_to_vmem [thread:$0]  %s6, 1024, %s34, [#allocation4], 128, 128, 8
    $region29: #{stablelm_decoder_layer.1} parent=1 // pred_fallthru
      _
    // Predicated region
    $region30: #{stablelm_decoder_layer.1} parent=1 // pred_check
      _
    $region31: #{stablelm_decoder_layer.1} parent=1 // pred_check_branch
      %41 = sbr.rel (0) target = $region33
    $region32: #{stablelm_decoder_layer.1} parent=1 // pred_region
      %s43 = ssub.s32 32, 32
      %44 = vsyncadd [#allocation6], %s43
      %s46 = sshll.u32 [#allocation5], 4
      %s47 = int_to_ptr.vmem [resolvable:$true] %s46
      %49 = dma.hbm_to_vmem [thread:$0]  %s7, 32, %s47, [#allocation6]
    $region33: #{stablelm_decoder_layer.1} parent=1 // pred_fallthru
      _
    // Predicated region
    $region34: #{stablelm_decoder_layer.1} parent=1 // pred_check
      _
    $region35: #{stablelm_decoder_layer.1} parent=1 // pred_check_branch
      %51 = sbr.rel (0) target = $region37
    $region36: #{stablelm_decoder_layer.1} parent=1 // pred_region
      _
    $region37: #{stablelm_decoder_layer.1} parent=1 // pred_fallthru
      _
    // Predicated region
    $region38: #{stablelm_decoder_layer.1} parent=1 // pred_check
      _
    $region39: #{stablelm_decoder_layer.1} parent=1 // pred_check_branch
      %53 = sbr.rel (0) target = $region41
    $region40: #{stablelm_decoder_layer.1} parent=1 // pred_region
      %54 = dma.done [#allocation4], 1024
    $region41: #{stablelm_decoder_layer.1} parent=1 // pred_fallthru
      _
    // Predicated region
    $region42: #{stablelm_decoder_layer.1} parent=1 // pred_check
      _
    $region43: #{stablelm_decoder_layer.1} parent=1 // pred_check_branch
      %56 = sbr.rel (0) target = $region45
    $region44: #{stablelm_decoder_layer.1} parent=1 // pred_region
      %57 = dma.done [#allocation6], 32
    $region45: #{stablelm_decoder_layer.1} parent=1 // pred_fallthru
      _
    %v59 = vld [vmem:[%s0] sm:$0xff]
    %vm60 = vcmask 523264
    %v61 = vsel %vm60, %v59, 0.0
    %62 = vadd.xlane.f32.xlu0 %v61
    %v63 = vpop.xlane.xlu0 %62
    %v64 = vrcp.pop 64.0
    %v65 = vmul.f32 %v63, %v64
    %v66 = vsub.f32 %v59, %v65
    %v67 = vmul.f32 %v66, %v66
    %v68 = vsel %vm60, %v67, 0.0
    %69 = vadd.xlane.f32.xlu0 %v68
    %v70 = vpop.xlane.xlu0 %69
    %v71 = vmul.f32 %v70, %v64
    %v72 = vadd.f32 %v71, 1e-05
    %v73 = vrsqrt.pop %v72
    %v74 = vmul.f32 %v66, %v73
    %v75 = vpack.c.bf16 %v74, %v74
    %v76 = vld [vmem:[%s1] sm:$0xff]
    %v77 = vld [vmem:[%s1 + $0x8] sm:$0xff]
    %v78 = vld [vmem:[%s1 + $0x10] sm:$0xff]
    %v79 = vld [vmem:[%s1 + $0x18] sm:$0xff]
    %v80 = vld [vmem:[%s1 + $0x20] sm:$0xff]
    %v81 = vld [vmem:[%s1 + $0x28] sm:$0xff]
    %v82 = vld [vmem:[%s1 + $0x30] sm:$0xff]
    %v83 = vld [vmem:[%s1 + $0x38] sm:$0xff]
    %v84 = vld [vmem:[%s2] sm:$0x3]
    %v86 = vlaneseq
    %v87 = vshrl.u32 %v86, 7
    %v88 = vsub.s32 0, %v87
    %v89 = vrot.slane %v84, %v88
    %v90 = vlaneseq
    %v91 = vshrl.u32 %v90, 7
    %v92 = vsub.s32 1, %v91
    %v93 = vrot.slane %v84, %v92
    %v104 = vunpack.c.l.b16 %v76
    %v105 = vunpack.c.h.b16 %v76
    %v106 = vunpack.c.l.b16 %v77
    %v107 = vunpack.c.h.b16 %v77
    %v108 = vunpack.c.l.b16 %v78
    %v109 = vunpack.c.h.b16 %v78
    %v110 = vunpack.c.l.b16 %v79
    %v111 = vunpack.c.h.b16 %v79
    %v112 = vunpack.c.l.b16 %v80
    %v113 = vunpack.c.h.b16 %v80
    %v114 = vunpack.c.l.b16 %v81
    %v115 = vunpack.c.h.b16 %v81
    %v116 = vunpack.c.l.b16 %v82
    %v117 = vunpack.c.h.b16 %v82
    %v118 = vunpack.c.l.b16 %v83
    %v119 = vunpack.c.h.b16 %v83
    %v120 = vpack.c.b16 %v106, %v104
    %v121 = vpack.c.b16 %v107, %v105
    %v122 = vpack.c.b16 %v110, %v108
    %v123 = vpack.c.b16 %v111, %v109
    %v124 = vpack.c.b16 %v114, %v112
    %v125 = vpack.c.b16 %v115, %v113
    %v126 = vpack.c.b16 %v118, %v116
    %v127 = vpack.c.b16 %v119, %v117
    %v137 = vsel %vm60, %v75, 0
    %139 = vmatprep.subr.bf16.mxu0 %v121
    %140 = vmatpush1.bf16.msra.mxu0 %v120
    %141 = vmatprep.subr.bf16.mxu0 %v123
    %142 = vmatpush1.bf16.msra.mxu0 %v122
    %143 = vmatprep.subr.bf16.mxu0 %v125
    %144 = vmatpush1.bf16.msra.mxu0 %v124
    %145 = vmatprep.subr.bf16.mxu0 %v127
    %146 = vmatpush1.bf16.msra.mxu0 %v126
    %147 = vmatprep.subr.bf16.mxu0 0
    %148 = vmatpush1.bf16.msra.mxu0 0
    %149 = vmatprep.subr.bf16.mxu0 0
    %150 = vmatpush1.bf16.msra.mxu0 0
    %151 = vmatprep.subr.bf16.mxu0 0
    %152 = vmatpush1.bf16.msra.mxu0 0
    %153 = vmatprep.subr.bf16.mxu0 0
    %154 = vmatpush1.bf16.msra.mxu0 0
    %155 = vmatprep.subr.bf16.mxu0 0
    %156 = vmatpush1.bf16.msra.mxu0 0
    %157 = vmatprep.subr.bf16.mxu0 0
    %158 = vmatpush1.bf16.msra.mxu0 0
    %159 = vmatprep.subr.bf16.mxu0 0
    %160 = vmatpush1.bf16.msra.mxu0 0
    %161 = vmatprep.subr.bf16.mxu0 0
    %162 = vmatpush1.bf16.msra.mxu0 0
    %163 = vmatprep.subr.bf16.mxu0 0
    %164 = vmatpush1.bf16.msra.mxu0 0
    %165 = vmatprep.subr.bf16.mxu0 0
    %166 = vmatpush1.bf16.msra.mxu0 0
    %167 = vmatprep.subr.bf16.mxu0 0
    %168 = vmatpush1.bf16.msra.mxu0 0
    %169 = vmatprep.subr.bf16.mxu0 0
    %170 = vmatpush1.bf16.msra.mxu0 0
    %171 = vmatprep.mubr.bf16.mxu0 0
    %172 = vmatmul.mubr.bf16.gmra.mrb[0].mxu0 %v137
    %v173 = vpop.f32.mrb[0].mxu0
    %v174 = vadd.f32 %v89, %v173
    %v175 = vpop.f32.mrb[0].mxu0
    %v176 = vadd.f32 %v93, %v175
    %v177 = vpop.f32.mrb[0].mxu0
    %v178 = vpop.f32.mrb[0].mxu0
    %179 = vdwg.mxu0
    %v180 = vld [vmem:[%s3] sm:$0xff]
    %v181 = vmul.f32 %v174, %v180
    %v182 = vld [vmem:[%s4] sm:$0xff]
    %v183 = vmul.f32 %v176, %v182
    %v184 = vadd.f32 %v181, %v183
    %186 = vrot.lane.b32.xlu0 %v184, 112
    %v187 = vpop.permute.xlu0 %186
    %189 = vrot.lane.b32.xlu0 %v184, 96
    %v190 = vpop.permute.xlu0 %189
    %192 = vrot.lane.b32.xlu0 %v184, 80
    %v193 = vpop.permute.xlu0 %192
    %v195 = vlaneseq
    %v196 = vshrl.u32 %v195, 7
    %v197 = vlaneseq
    %v198 = vand.u32 %v197, 127
    %vm199 = vcmp.ge.s32.totalorder %v196, %v198
    %v200 = vsel %vm199, 0.0, -1e+30
    %v201 = vpack.c.bf16 %v184, %v184
    %v202 = vpack.c.bf16 %v187, %v187
    %v203 = vpack.c.bf16 %v190, %v190
    %v204 = vpack.c.bf16 %v193, %v193
    %206 = vrot.lane.b32.xlu0 %v201, 64
    %v207 = vpop.permute.xlu0 %206
    %vm208 = vcmask 130048
    %v210 = vsel %vm208, %v201, 0
    %v213 = vsel %vm208, %v207, 0
    %215 = vmatprep.subr.bf16.mxu0 0
    %216 = vmatpush1.bf16.xpose.msra.mxu0 %v213
    %217 = vmatprep.subr.bf16.mxu0 0
    %218 = vmatpush1.bf16.xpose.msra.mxu0 0
    %219 = vmatprep.subr.bf16.mxu0 0
    %220 = vmatpush1.bf16.xpose.msra.mxu0 0
    %221 = vmatprep.subr.bf16.mxu0 0
    %222 = vmatpush1.bf16.xpose.msra.mxu0 0
    %223 = vmatprep.subr.bf16.mxu0 0
    %224 = vmatpush1.bf16.xpose.msra.mxu0 0
    %225 = vmatprep.subr.bf16.mxu0 0
    %226 = vmatpush1.bf16.xpose.msra.mxu0 0
    %227 = vmatprep.subr.bf16.mxu0 0
    %228 = vmatpush1.bf16.xpose.msra.mxu0 0
    %229 = vmatprep.subr.bf16.mxu0 0
    %230 = vmatpush1.bf16.xpose.msra.mxu0 0
    %231 = vmatprep.subr.bf16.mxu0 0
    %232 = vmatpush1.bf16.xpose.msra.mxu0 0
    %233 = vmatprep.subr.bf16.mxu0 0
    %234 = vmatpush1.bf16.xpose.msra.mxu0 0
    %235 = vmatprep.subr.bf16.mxu0 0
    %236 = vmatpush1.bf16.xpose.msra.mxu0 0
    %237 = vmatprep.subr.bf16.mxu0 0
    %238 = vmatpush1.bf16.xpose.msra.mxu0 0
    %239 = vmatprep.subr.bf16.mxu0 0
    %240 = vmatpush1.bf16.xpose.msra.mxu0 0
    %241 = vmatprep.subr.bf16.mxu0 0
    %242 = vmatpush1.bf16.xpose.msra.mxu0 0
    %243 = vmatprep.subr.bf16.mxu0 0
    %244 = vmatpush1.bf16.xpose.msra.mxu0 0
    %245 = vmatprep.subr.bf16.mxu0 0
    %246 = vmatpush1.bf16.xpose.msra.mxu0 0
    %247 = vmatprep.mubr.bf16.mxu0 0
    %248 = vmatmul.mubr.bf16.gmra.mrb[0].mxu0 %v210
    %v249 = vpop.f32.mrb[0].mxu0
    %v250 = vadd.f32 %v200, %v249
    %v251 = vpop.f32.mrb[0].mxu0
    %v252 = vpop.f32.mrb[0].mxu0
    %v253 = vpop.f32.mrb[0].mxu0
    %254 = vdwg.mxu0
    %v256 = vsel %vm208, %v202, 0
    %258 = vmatprep.subr.bf16.mxu0 0
    %259 = vmatpush1.bf16.xpose.msra.mxu0 %v213
    %260 = vmatprep.subr.bf16.mxu0 0
    %261 = vmatpush1.bf16.xpose.msra.mxu0 0
    %262 = vmatprep.subr.bf16.mxu0 0
    %263 = vmatpush1.bf16.xpose.msra.mxu0 0
    %264 = vmatprep.subr.bf16.mxu0 0
    %265 = vmatpush1.bf16.xpose.msra.mxu0 0
    %266 = vmatprep.subr.bf16.mxu0 0
    %267 = vmatpush1.bf16.xpose.msra.mxu0 0
    %268 = vmatprep.subr.bf16.mxu0 0
    %269 = vmatpush1.bf16.xpose.msra.mxu0 0
    %270 = vmatprep.subr.bf16.mxu0 0
    %271 = vmatpush1.bf16.xpose.msra.mxu0 0
    %272 = vmatprep.subr.bf16.mxu0 0
    %273 = vmatpush1.bf16.xpose.msra.mxu0 0
    %274 = vmatprep.subr.bf16.mxu0 0
    %275 = vmatpush1.bf16.xpose.msra.mxu0 0
    %276 = vmatprep.subr.bf16.mxu0 0
    %277 = vmatpush1.bf16.xpose.msra.mxu0 0
    %278 = vmatprep.subr.bf16.mxu0 0
    %279 = vmatpush1.bf16.xpose.msra.mxu0 0
    %280 = vmatprep.subr.bf16.mxu0 0
    %281 = vmatpush1.bf16.xpose.msra.mxu0 0
    %282 = vmatprep.subr.bf16.mxu0 0
    %283 = vmatpush1.bf16.xpose.msra.mxu0 0
    %284 = vmatprep.subr.bf16.mxu0 0
    %285 = vmatpush1.bf16.xpose.msra.mxu0 0
    %286 = vmatprep.subr.bf16.mxu0 0
    %287 = vmatpush1.bf16.xpose.msra.mxu0 0
    %288 = vmatprep.subr.bf16.mxu0 0
    %289 = vmatpush1.bf16.xpose.msra.mxu0 0
    %290 = vmatprep.mubr.bf16.mxu0 0
    %291 = vmatmul.mubr.bf16.gmra.mrb[0].mxu0 %v256
    %v292 = vpop.f32.mrb[0].mxu0
    %v293 = vadd.f32 %v200, %v292
    %v294 = vpop.f32.mrb[0].mxu0
    %v295 = vpop.f32.mrb[0].mxu0
    %v296 = vpop.f32.mrb[0].mxu0
    %297 = vdwg.mxu0
    %299 = vrot.lane.b32.xlu0 %v202, 64
    %v300 = vpop.permute.xlu0 %299
    %v302 = vsel %vm208, %v203, 0
    %v305 = vsel %vm208, %v300, 0
    %307 = vmatprep.subr.bf16.mxu0 0
    %308 = vmatpush1.bf16.xpose.msra.mxu0 %v305
    %309 = vmatprep.subr.bf16.mxu0 0
    %310 = vmatpush1.bf16.xpose.msra.mxu0 0
    %311 = vmatprep.subr.bf16.mxu0 0
    %312 = vmatpush1.bf16.xpose.msra.mxu0 0
    %313 = vmatprep.subr.bf16.mxu0 0
    %314 = vmatpush1.bf16.xpose.msra.mxu0 0
    %315 = vmatprep.subr.bf16.mxu0 0
    %316 = vmatpush1.bf16.xpose.msra.mxu0 0
    %317 = vmatprep.subr.bf16.mxu0 0
    %318 = vmatpush1.bf16.xpose.msra.mxu0 0
    %319 = vmatprep.subr.bf16.mxu0 0
    %320 = vmatpush1.bf16.xpose.msra.mxu0 0
    %321 = vmatprep.subr.bf16.mxu0 0
    %322 = vmatpush1.bf16.xpose.msra.mxu0 0
    %323 = vmatprep.subr.bf16.mxu0 0
    %324 = vmatpush1.bf16.xpose.msra.mxu0 0
    %325 = vmatprep.subr.bf16.mxu0 0
    %326 = vmatpush1.bf16.xpose.msra.mxu0 0
    %327 = vmatprep.subr.bf16.mxu0 0
    %328 = vmatpush1.bf16.xpose.msra.mxu0 0
    %329 = vmatprep.subr.bf16.mxu0 0
    %330 = vmatpush1.bf16.xpose.msra.mxu0 0
    %331 = vmatprep.subr.bf16.mxu0 0
    %332 = vmatpush1.bf16.xpose.msra.mxu0 0
    %333 = vmatprep.subr.bf16.mxu0 0
    %334 = vmatpush1.bf16.xpose.msra.mxu0 0
    %335 = vmatprep.subr.bf16.mxu0 0
    %336 = vmatpush1.bf16.xpose.msra.mxu0 0
    %337 = vmatprep.subr.bf16.mxu0 0
    %338 = vmatpush1.bf16.xpose.msra.mxu0 0
    %339 = vmatprep.mubr.bf16.mxu0 0
    %340 = vmatmul.mubr.bf16.gmra.mrb[0].mxu0 %v302
    %v341 = vpop.f32.mrb[0].mxu0
    %v342 = vadd.f32 %v200, %v341
    %v343 = vpop.f32.mrb[0].mxu0
    %v344 = vpop.f32.mrb[0].mxu0
    %v345 = vpop.f32.mrb[0].mxu0
    %346 = vdwg.mxu0
    %v348 = vsel %vm208, %v204, 0
    %350 = vmatprep.subr.bf16.mxu0 0
    %351 = vmatpush1.bf16.xpose.msra.mxu0 %v305
    %352 = vmatprep.subr.bf16.mxu0 0
    %353 = vmatpush1.bf16.xpose.msra.mxu0 0
    %354 = vmatprep.subr.bf16.mxu0 0
    %355 = vmatpush1.bf16.xpose.msra.mxu0 0
    %356 = vmatprep.subr.bf16.mxu0 0
    %357 = vmatpush1.bf16.xpose.msra.mxu0 0
    %358 = vmatprep.subr.bf16.mxu0 0
    %359 = vmatpush1.bf16.xpose.msra.mxu0 0
    %360 = vmatprep.subr.bf16.mxu0 0
    %361 = vmatpush1.bf16.xpose.msra.mxu0 0
    %362 = vmatprep.subr.bf16.mxu0 0
    %363 = vmatpush1.bf16.xpose.msra.mxu0 0
    %364 = vmatprep.subr.bf16.mxu0 0
    %365 = vmatpush1.bf16.xpose.msra.mxu0 0
    %366 = vmatprep.subr.bf16.mxu0 0
    %367 = vmatpush1.bf16.xpose.msra.mxu0 0
    %368 = vmatprep.subr.bf16.mxu0 0
    %369 = vmatpush1.bf16.xpose.msra.mxu0 0
    %370 = vmatprep.subr.bf16.mxu0 0
    %371 = vmatpush1.bf16.xpose.msra.mxu0 0
    %372 = vmatprep.subr.bf16.mxu0 0
    %373 = vmatpush1.bf16.xpose.msra.mxu0 0
    %374 = vmatprep.subr.bf16.mxu0 0
    %375 = vmatpush1.bf16.xpose.msra.mxu0 0
    %376 = vmatprep.subr.bf16.mxu0 0
    %377 = vmatpush1.bf16.xpose.msra.mxu0 0
    %378 = vmatprep.subr.bf16.mxu0 0
    %379 = vmatpush1.bf16.xpose.msra.mxu0 0
    %380 = vmatprep.subr.bf16.mxu0 0
    %381 = vmatpush1.bf16.xpose.msra.mxu0 0
    %382 = vmatprep.mubr.bf16.mxu0 0
    %383 = vmatmul.mubr.bf16.gmra.mrb[0].mxu0 %v348
    %v384 = vpop.f32.mrb[0].mxu0
    %v385 = vadd.f32 %v200, %v384
    %v386 = vpop.f32.mrb[0].mxu0
    %v387 = vpop.f32.mrb[0].mxu0
    %v388 = vpop.f32.mrb[0].mxu0
    %389 = vdwg.mxu0
    %vm390 = vcmask 64512
    %v391 = vsel %vm390, %v250, -inf
    %392 = vmax.xlane.f32.xlu0 %v391
    %v393 = vpop.xlane.xlu0 %392
    %v394 = vsel %vm390, %v293, -inf
    %395 = vmax.xlane.f32.xlu0 %v394
    %v396 = vpop.xlane.xlu0 %395
    %v397 = vsel %vm390, %v342, -inf
    %398 = vmax.xlane.f32.xlu0 %v397
    %v399 = vpop.xlane.xlu0 %398
    %v400 = vsel %vm390, %v385, -inf
    %401 = vmax.xlane.f32.xlu0 %v400
    %v402 = vpop.xlane.xlu0 %401
    %v403 = vsub.f32 %v250, %v393
    %v404 = vsub.f32 %v293, %v396
    %v405 = vsub.f32 %v342, %v399
    %v406 = vsub.f32 %v385, %v402
    %v407 = vmul.f32 %v403, 1.442695
    %v408 = vpow.pop %v407
    %v409 = vmul.f32 %v404, 1.442695
    %v410 = vpow.pop %v409
    %v411 = vmul.f32 %v405, 1.442695
    %v412 = vpow.pop %v411
    %v413 = vmul.f32 %v406, 1.442695
    %v414 = vpow.pop %v413
    %v415 = vsel %vm390, %v408, 0.0
    %416 = vadd.xlane.f32.xlu0 %v415
    %v417 = vpop.xlane.xlu0 %416
    %v418 = vsel %vm390, %v410, 0.0
    %419 = vadd.xlane.f32.xlu0 %v418
    %v420 = vpop.xlane.xlu0 %419
    %v421 = vsel %vm390, %v412, 0.0
    %422 = vadd.xlane.f32.xlu0 %v421
    %v423 = vpop.xlane.xlu0 %422
    %v424 = vsel %vm390, %v414, 0.0
    %425 = vadd.xlane.f32.xlu0 %v424
    %v426 = vpop.xlane.xlu0 %425
    %v427 = vpack.c.bf16 %v408, %v408
    %v428 = vpack.c.bf16 %v410, %v410
    %v429 = vpack.c.bf16 %v412, %v412
    %v430 = vpack.c.bf16 %v414, %v414
    %431 = vrot.lane.b32.xlu0 %v201, 32
    %v432 = vpop.permute.xlu0 %431
    %v434 = vsel %vm390, %v427, 0
    %vm436 = vcmask 1043456
    %v438 = vsel %vm436, %v432, 0
    %440 = vmatprep.subr.bf16.mxu0 0
    %441 = vmatpush1.bf16.msra.mxu0 %v438
    %442 = vmatprep.subr.bf16.mxu0 0
    %443 = vmatpush1.bf16.msra.mxu0 0
    %444 = vmatprep.subr.bf16.mxu0 0
    %445 = vmatpush1.bf16.msra.mxu0 0
    %446 = vmatprep.subr.bf16.mxu0 0
    %447 = vmatpush1.bf16.msra.mxu0 0
    %448 = vmatprep.subr.bf16.mxu0 0
    %449 = vmatpush1.bf16.msra.mxu0 0
    %450 = vmatprep.subr.bf16.mxu0 0
    %451 = vmatpush1.bf16.msra.mxu0 0
    %452 = vmatprep.subr.bf16.mxu0 0
    %453 = vmatpush1.bf16.msra.mxu0 0
    %454 = vmatprep.subr.bf16.mxu0 0
    %455 = vmatpush1.bf16.msra.mxu0 0
    %456 = vmatprep.subr.bf16.mxu0 0
    %457 = vmatpush1.bf16.msra.mxu0 0
    %458 = vmatprep.subr.bf16.mxu0 0
    %459 = vmatpush1.bf16.msra.mxu0 0
    %460 = vmatprep.subr.bf16.mxu0 0
    %461 = vmatpush1.bf16.msra.mxu0 0
    %462 = vmatprep.subr.bf16.mxu0 0
    %463 = vmatpush1.bf16.msra.mxu0 0
    %464 = vmatprep.subr.bf16.mxu0 0
    %465 = vmatpush1.bf16.msra.mxu0 0
    %466 = vmatprep.subr.bf16.mxu0 0
    %467 = vmatpush1.bf16.msra.mxu0 0
    %468 = vmatprep.subr.bf16.mxu0 0
    %469 = vmatpush1.bf16.msra.mxu0 0
    %470 = vmatprep.subr.bf16.mxu0 0
    %471 = vmatpush1.bf16.msra.mxu0 0
    %472 = vmatprep.mubr.bf16.mxu0 0
    %473 = vmatmul.mubr.bf16.gmra.mrb[0].mxu0 %v434
    %v474 = vpop.f32.mrb[0].mxu0
    %v475 = vadd.f32 0.0, %v474
    %v476 = vpop.f32.mrb[0].mxu0
    %v477 = vpop.f32.mrb[0].mxu0
    %v478 = vpop.f32.mrb[0].mxu0
    %479 = vdwg.mxu0
    %v481 = vsel %vm390, %v428, 0
    %483 = vmatprep.subr.bf16.mxu0 0
    %484 = vmatpush1.bf16.msra.mxu0 %v438
    %485 = vmatprep.subr.bf16.mxu0 0
    %486 = vmatpush1.bf16.msra.mxu0 0
    %487 = vmatprep.subr.bf16.mxu0 0
    %488 = vmatpush1.bf16.msra.mxu0 0
    %489 = vmatprep.subr.bf16.mxu0 0
    %490 = vmatpush1.bf16.msra.mxu0 0
    %491 = vmatprep.subr.bf16.mxu0 0
    %492 = vmatpush1.bf16.msra.mxu0 0
    %493 = vmatprep.subr.bf16.mxu0 0
    %494 = vmatpush1.bf16.msra.mxu0 0
    %495 = vmatprep.subr.bf16.mxu0 0
    %496 = vmatpush1.bf16.msra.mxu0 0
    %497 = vmatprep.subr.bf16.mxu0 0
    %498 = vmatpush1.bf16.msra.mxu0 0
    %499 = vmatprep.subr.bf16.mxu0 0
    %500 = vmatpush1.bf16.msra.mxu0 0
    %501 = vmatprep.subr.bf16.mxu0 0
    %502 = vmatpush1.bf16.msra.mxu0 0
    %503 = vmatprep.subr.bf16.mxu0 0
    %504 = vmatpush1.bf16.msra.mxu0 0
    %505 = vmatprep.subr.bf16.mxu0 0
    %506 = vmatpush1.bf16.msra.mxu0 0
    %507 = vmatprep.subr.bf16.mxu0 0
    %508 = vmatpush1.bf16.msra.mxu0 0
    %509 = vmatprep.subr.bf16.mxu0 0
    %510 = vmatpush1.bf16.msra.mxu0 0
    %511 = vmatprep.subr.bf16.mxu0 0
    %512 = vmatpush1.bf16.msra.mxu0 0
    %513 = vmatprep.subr.bf16.mxu0 0
    %514 = vmatpush1.bf16.msra.mxu0 0
    %515 = vmatprep.mubr.bf16.mxu0 0
    %516 = vmatmul.mubr.bf16.gmra.mrb[0].mxu0 %v481
    %v517 = vpop.f32.mrb[0].mxu0
    %v518 = vadd.f32 0.0, %v517
    %v519 = vpop.f32.mrb[0].mxu0
    %v520 = vpop.f32.mrb[0].mxu0
    %v521 = vpop.f32.mrb[0].mxu0
    %522 = vdwg.mxu0
    %523 = vrot.lane.b32.xlu0 %v202, 32
    %v524 = vpop.permute.xlu0 %523
    %v526 = vsel %vm390, %v429, 0
    %v529 = vsel %vm436, %v524, 0
    %531 = vmatprep.subr.bf16.mxu0 0
    %532 = vmatpush1.bf16.msra.mxu0 %v529
    %533 = vmatprep.subr.bf16.mxu0 0
    %534 = vmatpush1.bf16.msra.mxu0 0
    %535 = vmatprep.subr.bf16.mxu0 0
    %536 = vmatpush1.bf16.msra.mxu0 0
    %537 = vmatprep.subr.bf16.mxu0 0
    %538 = vmatpush1.bf16.msra.mxu0 0
    %539 = vmatprep.subr.bf16.mxu0 0
    %540 = vmatpush1.bf16.msra.mxu0 0
    %541 = vmatprep.subr.bf16.mxu0 0
    %542 = vmatpush1.bf16.msra.mxu0 0
    %543 = vmatprep.subr.bf16.mxu0 0
    %544 = vmatpush1.bf16.msra.mxu0 0
    %545 = vmatprep.subr.bf16.mxu0 0
    %546 = vmatpush1.bf16.msra.mxu0 0
    %547 = vmatprep.subr.bf16.mxu0 0
    %548 = vmatpush1.bf16.msra.mxu0 0
    %549 = vmatprep.subr.bf16.mxu0 0
    %550 = vmatpush1.bf16.msra.mxu0 0
    %551 = vmatprep.subr.bf16.mxu0 0
    %552 = vmatpush1.bf16.msra.mxu0 0
    %553 = vmatprep.subr.bf16.mxu0 0
    %554 = vmatpush1.bf16.msra.mxu0 0
    %555 = vmatprep.subr.bf16.mxu0 0
    %556 = vmatpush1.bf16.msra.mxu0 0
    %557 = vmatprep.subr.bf16.mxu0 0
    %558 = vmatpush1.bf16.msra.mxu0 0
    %559 = vmatprep.subr.bf16.mxu0 0
    %560 = vmatpush1.bf16.msra.mxu0 0
    %561 = vmatprep.subr.bf16.mxu0 0
    %562 = vmatpush1.bf16.msra.mxu0 0
    %563 = vmatprep.mubr.bf16.mxu0 0
    %564 = vmatmul.mubr.bf16.gmra.mrb[0].mxu0 %v526
    %v565 = vpop.f32.mrb[0].mxu0
    %v566 = vadd.f32 0.0, %v565
    %v567 = vpop.f32.mrb[0].mxu0
    %v568 = vpop.f32.mrb[0].mxu0
    %v569 = vpop.f32.mrb[0].mxu0
    %570 = vdwg.mxu0
    %v572 = vsel %vm390, %v430, 0
    %574 = vmatprep.subr.bf16.mxu0 0
    %575 = vmatpush1.bf16.msra.mxu0 %v529
    %576 = vmatprep.subr.bf16.mxu0 0
    %577 = vmatpush1.bf16.msra.mxu0 0
    %578 = vmatprep.subr.bf16.mxu0 0
    %579 = vmatpush1.bf16.msra.mxu0 0
    %580 = vmatprep.subr.bf16.mxu0 0
    %581 = vmatpush1.bf16.msra.mxu0 0
    %582 = vmatprep.subr.bf16.mxu0 0
    %583 = vmatpush1.bf16.msra.mxu0 0
    %584 = vmatprep.subr.bf16.mxu0 0
    %585 = vmatpush1.bf16.msra.mxu0 0
    %586 = vmatprep.subr.bf16.mxu0 0
    %587 = vmatpush1.bf16.msra.mxu0 0
    %588 = vmatprep.subr.bf16.mxu0 0
    %589 = vmatpush1.bf16.msra.mxu0 0
    %590 = vmatprep.subr.bf16.mxu0 0
    %591 = vmatpush1.bf16.msra.mxu0 0
    %592 = vmatprep.subr.bf16.mxu0 0
    %593 = vmatpush1.bf16.msra.mxu0 0
    %594 = vmatprep.subr.bf16.mxu0 0
    %595 = vmatpush1.bf16.msra.mxu0 0
    %596 = vmatprep.subr.bf16.mxu0 0
    %597 = vmatpush1.bf16.msra.mxu0 0
    %598 = vmatprep.subr.bf16.mxu0 0
    %599 = vmatpush1.bf16.msra.mxu0 0
    %600 = vmatprep.subr.bf16.mxu0 0
    %601 = vmatpush1.bf16.msra.mxu0 0
    %602 = vmatprep.subr.bf16.mxu0 0
    %603 = vmatpush1.bf16.msra.mxu0 0
    %604 = vmatprep.subr.bf16.mxu0 0
    %605 = vmatpush1.bf16.msra.mxu0 0
    %606 = vmatprep.mubr.bf16.mxu0 0
    %607 = vmatmul.mubr.bf16.gmra.mrb[0].mxu0 %v572
    %v608 = vpop.f32.mrb[0].mxu0
    %v609 = vadd.f32 0.0, %v608
    %v610 = vpop.f32.mrb[0].mxu0
    %v611 = vpop.f32.mrb[0].mxu0
    %v612 = vpop.f32.mrb[0].mxu0
    %613 = vdwg.mxu0
    %v614 = vrcp.pop %v417
    %v615 = vrcp.pop %v420
    %v616 = vrcp.pop %v423
    %v617 = vrcp.pop %v426
    %v618 = vmul.f32 %v475, %v614
    %v619 = vmul.f32 %v518, %v615
    %v620 = vmul.f32 %v566, %v616
    %v621 = vmul.f32 %v609, %v617
    %622 = vst.msk [vmem:[#allocation2] sm:$0xff] %vm208, %v618
    %624 = vrot.lane.b32.xlu0 %v619, 16
    %v625 = vpop.permute.xlu0 %624
    %vm627 = vcmask 261248
    %628 = vst.msk [vmem:[#allocation2] sm:$0xff] %vm627, %v625
    %630 = vrot.lane.b32.xlu0 %v620, 32
    %v631 = vpop.permute.xlu0 %630
    %vm633 = vcmask 392448
    %634 = vst.msk [vmem:[#allocation2] sm:$0xff] %vm633, %v631
    %636 = vrot.lane.b32.xlu0 %v621, 48
    %v637 = vpop.permute.xlu0 %636
    %vm639 = vcmask 523648
    %640 = vst.msk [vmem:[#allocation2] sm:$0xff] %vm639, %v637
    %v641 = vld [vmem:[#allocation2] sm:$0xff]
    %v642 = vpack.c.bf16 %v641, %v641
    %v643 = vld [vmem:[%s5] sm:$0xf]
    %v644 = vld [vmem:[%s5 + $0x4] sm:$0xf]
    %v645 = vld [vmem:[%s5 + $0x8] sm:$0xf]
    %v646 = vld [vmem:[%s5 + $0xc] sm:$0xf]
    %v647 = vld [vmem:[%s5 + $0x10] sm:$0xf]
    %v648 = vld [vmem:[%s5 + $0x14] sm:$0xf]
    %v649 = vld [vmem:[%s5 + $0x18] sm:$0xf]
    %v650 = vld [vmem:[%s5 + $0x1c] sm:$0xf]
    %v659 = vunpack.c.l.b16 %v643
    %v660 = vunpack.c.l.b16 %v644
    %v661 = vunpack.c.l.b16 %v645
    %v662 = vunpack.c.l.b16 %v646
    %v663 = vunpack.c.l.b16 %v647
    %v664 = vunpack.c.l.b16 %v648
    %v665 = vunpack.c.l.b16 %v649
    %v666 = vunpack.c.l.b16 %v650
    %v667 = vpack.c.b16 %v660, %v659
    %v668 = vpack.c.b16 %v662, %v661
    %v669 = vpack.c.b16 %v664, %v663
    %v670 = vpack.c.b16 %v666, %v665
    %v676 = vsel %vm60, %v642, 0
    %678 = vmatprep.subr.bf16.mxu0 0
    %679 = vmatpush1.bf16.msra.mxu0 %v667
    %680 = vmatprep.subr.bf16.mxu0 0
    %681 = vmatpush1.bf16.msra.mxu0 %v668
    %682 = vmatprep.subr.bf16.mxu0 0
    %683 = vmatpush1.bf16.msra.mxu0 %v669
    %684 = vmatprep.subr.bf16.mxu0 0
    %685 = vmatpush1.bf16.msra.mxu0 %v670
    %686 = vmatprep.subr.bf16.mxu0 0
    %687 = vmatpush1.bf16.msra.mxu0 0
    %688 = vmatprep.subr.bf16.mxu0 0
    %689 = vmatpush1.bf16.msra.mxu0 0
    %690 = vmatprep.subr.bf16.mxu0 0
    %691 = vmatpush1.bf16.msra.mxu0 0
    %692 = vmatprep.subr.bf16.mxu0 0
    %693 = vmatpush1.bf16.msra.mxu0 0
    %694 = vmatprep.subr.bf16.mxu0 0
    %695 = vmatpush1.bf16.msra.mxu0 0
    %696 = vmatprep.subr.bf16.mxu0 0
    %697 = vmatpush1.bf16.msra.mxu0 0
    %698 = vmatprep.subr.bf16.mxu0 0
    %699 = vmatpush1.bf16.msra.mxu0 0
    %700 = vmatprep.subr.bf16.mxu0 0
    %701 = vmatpush1.bf16.msra.mxu0 0
    %702 = vmatprep.subr.bf16.mxu0 0
    %703 = vmatpush1.bf16.msra.mxu0 0
    %704 = vmatprep.subr.bf16.mxu0 0
    %705 = vmatpush1.bf16.msra.mxu0 0
    %706 = vmatprep.subr.bf16.mxu0 0
    %707 = vmatpush1.bf16.msra.mxu0 0
    %708 = vmatprep.subr.bf16.mxu0 0
    %709 = vmatpush1.bf16.msra.mxu0 0
    %710 = vmatprep.mubr.bf16.mxu0 0
    %711 = vmatmul.mubr.bf16.gmra.mrb[0].mxu0 %v676
    %v712 = vpop.f32.mrb[0].mxu0
    %v713 = vadd.f32 0.0, %v712
    %v714 = vpop.f32.mrb[0].mxu0
    %v715 = vpop.f32.mrb[0].mxu0
    %v716 = vpop.f32.mrb[0].mxu0
    %717 = vdwg.mxu0
    %v718 = vadd.f32 %v59, %v713
    %v719 = vsel %vm60, %v718, 0.0
    %720 = vadd.xlane.f32.xlu0 %v719
    %v721 = vpop.xlane.xlu0 %720
    %v722 = vmul.f32 %v721, %v64
    %v723 = vsub.f32 %v718, %v722
    %v724 = vmul.f32 %v723, %v723
    %v725 = vsel %vm60, %v724, 0.0
    %726 = vadd.xlane.f32.xlu0 %v725
    %v727 = vpop.xlane.xlu0 %726
    %v728 = vmul.f32 %v727, %v64
    %v729 = vadd.f32 %v728, 1e-05
    %v730 = vrsqrt.pop %v729
    %v731 = vmul.f32 %v723, %v730
    %v732 = vpack.c.bf16 %v731, %v731
    %v733 = vld [vmem:[#allocation3] sm:$0xff]
    %v734 = vld [vmem:[#allocation3 + $0x8] sm:$0xff]
    %v735 = vld [vmem:[#allocation3 + $0x10] sm:$0xff]
    %v736 = vld [vmem:[#allocation3 + $0x18] sm:$0xff]
    %v737 = vld [vmem:[#allocation3 + $0x20] sm:$0xff]
    %v738 = vld [vmem:[#allocation3 + $0x28] sm:$0xff]
    %v739 = vld [vmem:[#allocation3 + $0x30] sm:$0xff]
    %v740 = vld [vmem:[#allocation3 + $0x38] sm:$0xff]
    %v741 = vld [vmem:[#allocation5] sm:$0x3]
    %v743 = vlaneseq
    %v744 = vshrl.u32 %v743, 7
    %v745 = vsub.s32 0, %v744
    %v746 = vrot.slane %v741, %v745
    %v747 = vlaneseq
    %v748 = vshrl.u32 %v747, 7
    %v749 = vsub.s32 1, %v748
    %v750 = vrot.slane %v741, %v749
    %v761 = vunpack.c.l.b16 %v733
    %v762 = vunpack.c.h.b16 %v733
    %v763 = vunpack.c.l.b16 %v734
    %v764 = vunpack.c.h.b16 %v734
    %v765 = vunpack.c.l.b16 %v735
    %v766 = vunpack.c.h.b16 %v735
    %v767 = vunpack.c.l.b16 %v736
    %v768 = vunpack.c.h.b16 %v736
    %v769 = vunpack.c.l.b16 %v737
    %v770 = vunpack.c.h.b16 %v737
    %v771 = vunpack.c.l.b16 %v738
    %v772 = vunpack.c.h.b16 %v738
    %v773 = vunpack.c.l.b16 %v739
    %v774 = vunpack.c.h.b16 %v739
    %v775 = vunpack.c.l.b16 %v740
    %v776 = vunpack.c.h.b16 %v740
    %v777 = vpack.c.b16 %v763, %v761
    %v778 = vpack.c.b16 %v764, %v762
    %v779 = vpack.c.b16 %v767, %v765
    %v780 = vpack.c.b16 %v768, %v766
    %v781 = vpack.c.b16 %v771, %v769
    %v782 = vpack.c.b16 %v772, %v770
    %v783 = vpack.c.b16 %v775, %v773
    %v784 = vpack.c.b16 %v776, %v774
    %v794 = vsel %vm60, %v732, 0
    %796 = vmatprep.subr.bf16.mxu0 %v778
    %797 = vmatpush1.bf16.msra.mxu0 %v777
    %798 = vmatprep.subr.bf16.mxu0 %v780
    %799 = vmatpush1.bf16.msra.mxu0 %v779
    %800 = vmatprep.subr.bf16.mxu0 %v782
    %801 = vmatpush1.bf16.msra.mxu0 %v781
    %802 = vmatprep.subr.bf16.mxu0 %v784
    %803 = vmatpush1.bf16.msra.mxu0 %v783
    %804 = vmatprep.subr.bf16.mxu0 0
    %805 = vmatpush1.bf16.msra.mxu0 0
    %806 = vmatprep.subr.bf16.mxu0 0
    %807 = vmatpush1.bf16.msra.mxu0 0
    %808 = vmatprep.subr.bf16.mxu0 0
    %809 = vmatpush1.bf16.msra.mxu0 0
    %810 = vmatprep.subr.bf16.mxu0 0
    %811 = vmatpush1.bf16.msra.mxu0 0
    %812 = vmatprep.subr.bf16.mxu0 0
    %813 = vmatpush1.bf16.msra.mxu0 0
    %814 = vmatprep.subr.bf16.mxu0 0
    %815 = vmatpush1.bf16.msra.mxu0 0
    %816 = vmatprep.subr.bf16.mxu0 0
    %817 = vmatpush1.bf16.msra.mxu0 0
    %818 = vmatprep.subr.bf16.mxu0 0
    %819 = vmatpush1.bf16.msra.mxu0 0
    %820 = vmatprep.subr.bf16.mxu0 0
    %821 = vmatpush1.bf16.msra.mxu0 0
    %822 = vmatprep.subr.bf16.mxu0 0
    %823 = vmatpush1.bf16.msra.mxu0 0
    %824 = vmatprep.subr.bf16.mxu0 0
    %825 = vmatpush1.bf16.msra.mxu0 0
    %826 = vmatprep.subr.bf16.mxu0 0
    %827 = vmatpush1.bf16.msra.mxu0 0
    %828 = vmatprep.mubr.bf16.mxu0 0
    %829 = vmatmul.mubr.bf16.gmra.mrb[0].mxu0 %v794
    %v830 = vpop.f32.mrb[0].mxu0
    %v831 = vadd.f32 %v746, %v830
    %v832 = vpop.f32.mrb[0].mxu0
    %v833 = vadd.f32 %v750, %v832
    %v834 = vpop.f32.mrb[0].mxu0
    %v835 = vpop.f32.mrb[0].mxu0
    %836 = vdwg.mxu0
    %v837 = vxor.u32 %v831, 2147483648
    %v838 = vmul.f32 %v837, 1.442695
    %v839 = vpow.pop %v838
    %v840 = vadd.f32 %v839, 1.0
    %v841 = vrcp.pop %v840
    %v842 = vmul.f32 1.0, %v841
    %v843 = vmul.f32 %v831, %v842
    %v844 = vmul.f32 %v843, %v833
    %v845 = vpack.c.bf16 %v844, %v844
    %v846 = vld [vmem:[%s8] sm:$0xf]
    %v847 = vld [vmem:[%s8 + $0x4] sm:$0xf]
    %v848 = vld [vmem:[%s8 + $0x8] sm:$0xf]
    %v849 = vld [vmem:[%s8 + $0xc] sm:$0xf]
    %v850 = vld [vmem:[%s8 + $0x10] sm:$0xf]
    %v851 = vld [vmem:[%s8 + $0x14] sm:$0xf]
    %v852 = vld [vmem:[%s8 + $0x18] sm:$0xf]
    %v853 = vld [vmem:[%s8 + $0x1c] sm:$0xf]
    %v854 = vld [vmem:[%s8 + $0x20] sm:$0xf]
    %v855 = vld [vmem:[%s8 + $0x24] sm:$0xf]
    %v856 = vld [vmem:[%s8 + $0x28] sm:$0xf]
    %v857 = vld [vmem:[%s8 + $0x2c] sm:$0xf]
    %v858 = vld [vmem:[%s8 + $0x30] sm:$0xf]
    %v859 = vld [vmem:[%s8 + $0x34] sm:$0xf]
    %v860 = vld [vmem:[%s8 + $0x38] sm:$0xf]
    %v861 = vld [vmem:[%s8 + $0x3c] sm:$0xf]
    %v878 = vunpack.c.l.b16 %v846
    %v879 = vunpack.c.l.b16 %v847
    %v880 = vunpack.c.l.b16 %v848
    %v881 = vunpack.c.l.b16 %v849
    %v882 = vunpack.c.l.b16 %v850
    %v883 = vunpack.c.l.b16 %v851
    %v884 = vunpack.c.l.b16 %v852
    %v885 = vunpack.c.l.b16 %v853
    %v886 = vunpack.c.l.b16 %v854
    %v887 = vunpack.c.l.b16 %v855
    %v888 = vunpack.c.l.b16 %v856
    %v889 = vunpack.c.l.b16 %v857
    %v890 = vunpack.c.l.b16 %v858
    %v891 = vunpack.c.l.b16 %v859
    %v892 = vunpack.c.l.b16 %v860
    %v893 = vunpack.c.l.b16 %v861
    %v894 = vpack.c.b16 %v879, %v878
    %v895 = vpack.c.b16 %v881, %v880
    %v896 = vpack.c.b16 %v883, %v882
    %v897 = vpack.c.b16 %v885, %v884
    %v898 = vpack.c.b16 %v887, %v886
    %v899 = vpack.c.b16 %v889, %v888
    %v900 = vpack.c.b16 %v891, %v890
    %v901 = vpack.c.b16 %v893, %v892
    %910 = vmatprep.subr.bf16.mxu0 0
    %911 = vmatpush1.bf16.msra.mxu0 %v894
    %912 = vmatprep.subr.bf16.mxu0 0
    %913 = vmatpush1.bf16.msra.mxu0 %v895
    %914 = vmatprep.subr.bf16.mxu0 0
    %915 = vmatpush1.bf16.msra.mxu0 %v896
    %916 = vmatprep.subr.bf16.mxu0 0
    %917 = vmatpush1.bf16.msra.mxu0 %v897
    %918 = vmatprep.subr.bf16.mxu0 0
    %919 = vmatpush1.bf16.msra.mxu0 %v898
    %920 = vmatprep.subr.bf16.mxu0 0
    %921 = vmatpush1.bf16.msra.mxu0 %v899
    %922 = vmatprep.subr.bf16.mxu0 0
    %923 = vmatpush1.bf16.msra.mxu0 %v900
    %924 = vmatprep.subr.bf16.mxu0 0
    %925 = vmatpush1.bf16.msra.mxu0 %v901
    %926 = vmatprep.subr.bf16.mxu0 0
    %927 = vmatpush1.bf16.msra.mxu0 0
    %928 = vmatprep.subr.bf16.mxu0 0
    %929 = vmatpush1.bf16.msra.mxu0 0
    %930 = vmatprep.subr.bf16.mxu0 0
    %931 = vmatpush1.bf16.msra.mxu0 0
    %932 = vmatprep.subr.bf16.mxu0 0
    %933 = vmatpush1.bf16.msra.mxu0 0
    %934 = vmatprep.subr.bf16.mxu0 0
    %935 = vmatpush1.bf16.msra.mxu0 0
    %936 = vmatprep.subr.bf16.mxu0 0
    %937 = vmatpush1.bf16.msra.mxu0 0
    %938 = vmatprep.subr.bf16.mxu0 0
    %939 = vmatpush1.bf16.msra.mxu0 0
    %940 = vmatprep.subr.bf16.mxu0 0
    %941 = vmatpush1.bf16.msra.mxu0 0
    %942 = vmatprep.mubr.bf16.mxu0 0
    %943 = vmatmul.mubr.bf16.gmra.mrb[0].mxu0 %v845
    %v944 = vpop.f32.mrb[0].mxu0
    %v945 = vadd.f32 0.0, %v944
    %v946 = vpop.f32.mrb[0].mxu0
    %v947 = vpop.f32.mrb[0].mxu0
    %v948 = vpop.f32.mrb[0].mxu0
    %949 = vdwg.mxu0
    %v950 = vadd.f32 %v718, %v945
    %952 = vrot.lane.b32.xlu0 %v718, 64
    %v953 = vpop.permute.xlu0 %952
    %v955 = vsel %vm60, %v950, %v953
    %956 = vst [vmem:[%s9] sm:$0xff] %v955
    // Predicated region
    $region46: #{stablelm_decoder_layer.1} parent=1 // pred_check
      _
    $region47: #{stablelm_decoder_layer.1} parent=1 // pred_check_branch
      %958 = sbr.rel (0) target = $region49
    $region48: #{stablelm_decoder_layer.1} parent=1 // pred_region
      _
    $region49: #{stablelm_decoder_layer.1} parent=1 // pred_fallthru
      _
    // Predicated region
    $region50: #{stablelm_decoder_layer.1} parent=1 // pred_check
      _
    $region51: #{stablelm_decoder_layer.1} parent=1 // pred_check_branch
      %960 = sbr.rel (0) target = $region53
    $region52: #{stablelm_decoder_layer.1} parent=1 // pred_region
      _
    $region53: #{stablelm_decoder_layer.1} parent=1 // pred_fallthru
      _
    %961 = vsyncpa [#allocation4], 1
    %962 = vsyncpa [#allocation6], 1

</llo_original>
